<compile_context>
chip_gen: v5e
topology: v5e:2x2
jax: 0.10.0
libtpu: 0.0.40
codegen_flags: <defaults>
</compile_context>

<pallas_src>
import jax
import jax.numpy as jnp
from jax.experimental import pallas as pl
from jax.experimental.pallas import tpu as pltpu


LAYER_DIMS = [(64, 32), (32, 16), (16, 16), (16, 8), (8, 3)]
IN_FEAT = 64          # flattened input features
NUM_CLASSES = 3       # true output width
OUT_PAD = 8           # per-sample padded logits width (3 -> 8)
PACK = 2              # samples packed per kernel row (block-diagonal weights)
PACKED_IN = PACK * IN_FEAT    # 128: lane-dense minor dim for x
PACKED_OUT = PACK * OUT_PAD   # 16: useful lanes in the output store


def fnn_kernel(x_ref,
               w1_ref, b1_ref, w2_ref, b2_ref, w3_ref, b3_ref,
               w4_ref, b4_ref, w5_ref, b5_ref,
               o_ref):
    layers = ((w1_ref, b1_ref), (w2_ref, b2_ref), (w3_ref, b3_ref),
              (w4_ref, b4_ref), (w5_ref, b5_ref))
    # In-kernel cast (free VPU op hidden under DMA/MXU): bf16 operands,
    # f32 accumulation -> single-pass MXU, explicit numerics.
    h = x_ref[...].astype(jnp.bfloat16)
    y = None
    for idx, (w_ref, b_ref) in enumerate(layers):
        y = jnp.dot(h, w_ref[...], preferred_element_type=jnp.float32) + b_ref[...]
        if idx < len(layers) - 1:
            h = jnp.maximum(y, 0.0).astype(jnp.bfloat16)  # ReLU in f32, re-quantize
    o_ref[...] = y  # no ReLU after the last layer


def init_params(key):
    """PyTorch-style (Kaiming-uniform-ish) init; weights stored (in, out), f32."""
    params = []
    for (fan_in, fan_out) in LAYER_DIMS:
        key, kw, kb = jax.random.split(key, 3)
        bound = 1.0 / jnp.sqrt(jnp.float32(fan_in))
        w = jax.random.uniform(kw, (fan_in, fan_out), jnp.float32, -bound, bound)
        b = jax.random.uniform(kb, (1, fan_out), jnp.float32, -bound, bound)
        params.append((w, b))
    return params


def _round_up(x, m):
    return ((x + m - 1) // m) * m


def _block_diag2(m):
    r, c = m.shape
    z = jnp.zeros((r, c), m.dtype)
    top = jnp.concatenate([m, z], axis=1)
    bot = jnp.concatenate([z, m], axis=1)
    return jnp.concatenate([top, bot], axis=0)


def prepare_packed_params(params, *, operand_dtype=jnp.bfloat16):
    """One-time prep (keep out of the per-call path): pad the last layer
    3 -> OUT_PAD, build block-diagonal 2-sample weights in the MXU operand
    dtype, tile the biases (kept f32 for the f32 accumulate/bias/ReLU path)."""
    assert len(params) == len(LAYER_DIMS)
    packed = []
    for idx, (w, b) in enumerate(params):
        if idx == len(params) - 1:
            fout = LAYER_DIMS[idx][1]
            w = jnp.pad(w, ((0, 0), (0, OUT_PAD - fout)))
            b = jnp.pad(b, ((0, 0), (0, OUT_PAD - fout)))
        wp = _block_diag2(w).astype(operand_dtype)          # (2*fin, 2*fout)
        bp = jnp.concatenate([b, b], axis=1).astype(jnp.float32)  # (1, 2*fout)
        packed.extend([wp, bp])
    return packed


def fnn_forward(x, packed_params, *, tb=8192):
    """Matches: x = x.float(); x = x.view(x.size(0), -1); x = self.liner(x)."""
    b = x.shape[0]
    xf = x.reshape(b, -1)  # keep original dtype; cast happens inside the kernel
    feat = xf.shape[1]
    assert feat == IN_FEAT, f"flattened feature dim must be {IN_FEAT}, got {feat}"

    # Pack PACK=2 samples per kernel row (lane-dense 128-wide minor dim).
    rows = b
    if rows % PACK != 0:
        # Rare ragged case (odd batch): pad a single row so the packing
        # reshape is valid.  Even batches never touch x before the kernel DMA.
        xf = jnp.pad(xf, ((0, PACK - rows % PACK), (0, 0)))
        rows = xf.shape[0]
    rb = rows // PACK
    xp = xf.reshape(rb, PACKED_IN)  # contiguous reshape

    # Batch tile (in packed rows): big to amortize per-grid-step overhead,
    # capped so there are >= 2 tiles for v7x's two TensorCores whenever the
    # batch is large enough; exact fit for tiny batches (no OOB at all).
    if rb <= 8:
        tb_eff = rb
    else:
        tb_eff = min(tb, _round_up(pl.cdiv(rb, 2), 8))
    grid = (pl.cdiv(rb, tb_eff),)  # ragged tail handled by Pallas partial blocks

    def const_spec(shape):
        # Constant block index -> DMA'd once, VMEM-resident across all tiles.
        return pl.BlockSpec(shape, lambda i: (0, 0))

    in_specs = [pl.BlockSpec((tb_eff, PACKED_IN), lambda i: (i, 0))]
    in_specs += [const_spec(p.shape) for p in packed_params]
    out_spec = pl.BlockSpec((tb_eff, PACKED_OUT), lambda i: (i, 0))
    out_shape = jax.ShapeDtypeStruct((rb, PACKED_OUT), jnp.float32)

    out = pl.pallas_call(
        fnn_kernel,
        out_shape=out_shape,
        grid_spec=pltpu.PrefetchScalarGridSpec(
            num_scalar_prefetch=0,
            grid=grid,
            in_specs=in_specs,
            out_specs=out_spec,
        ),
        compiler_params=pltpu.CompilerParams(
            # Independent batch tiles: shard across v7x's two TensorCores.
            dimension_semantics=("parallel",),
            # Explicit limit: safe on v7x (64 MiB physical) and raises v5e's
            # 16 MiB scoped default so TB=8192 double-buffers cleanly.
            vmem_limit_bytes=32 * 1024 * 1024,
        ),
    )(xp, *packed_params)

    # Un-interleave the 2-sample packing (free reshape) and drop padding.
    logits = out.reshape(rb * PACK, OUT_PAD)[:b, :NUM_CLASSES]
    return logits


def _ref_forward_f32(x, params):
    h = x.astype(jnp.float32).reshape(x.shape[0], -1)
    for i, (w, bia) in enumerate(params):
        h = h @ w + bia
        if i < len(params) - 1:
            h = jnp.maximum(h, 0.0)
    return h


def _ref_forward_bf16_operands(x, params):
    # Same math as the kernel: bf16 operands, f32 accumulation / bias / ReLU.
    h = x.astype(jnp.float32).reshape(x.shape[0], -1).astype(jnp.bfloat16)
    y = None
    for i, (w, bia) in enumerate(params):
        y = jnp.dot(h, w.astype(jnp.bfloat16),
                    preferred_element_type=jnp.float32) + bia
        if i < len(params) - 1:
            h = jnp.maximum(y, 0.0).astype(jnp.bfloat16)
    return y


if __name__ == "__main__":
    # Input consistent with x.view(B, -1) -> (B, 64): use (2, 4, 4, 4).
    key = jax.random.PRNGKey(0)
    x = jax.random.normal(key, (2, 4, 4, 4), jnp.float32)

    params = init_params(jax.random.PRNGKey(42))
    packed = prepare_packed_params(params)  # one-time weight prep

    out = fnn_forward(x, packed)
    out = jax.block_until_ready(out)
    assert out.shape == (2, 3)

    # Tight check against a reference using the same bf16-operand math.
    ref_bf16 = _ref_forward_bf16_operands(x, params)
    assert jnp.allclose(out, ref_bf16, atol=1e-3, rtol=1e-3)

    # Loose sanity check against the full-f32 PyTorch-equivalent math
    # (bf16 MXU operands => small, bounded deviation).
    ref_f32 = _ref_forward_f32(x, params)
    assert jnp.allclose(out, ref_f32, atol=5e-2, rtol=5e-2)

    # Exercise the ragged / multi-tile path (odd batch, partial last block).
    key2 = jax.random.fold_in(key, 1)
    x2 = jax.random.normal(key2, (19, 4, 4, 4), jnp.float32)
    out2 = jax.block_until_ready(fnn_forward(x2, packed))
    assert out2.shape == (19, 3)
    assert jnp.allclose(out2, _ref_forward_f32(x2, params), atol=5e-2, rtol=5e-2)

    print("KERNEL_OK")
</pallas_src>

<mosaic_0001>
module attributes {stable_mosaic.version = 11 : i64} {
  func.func @fnn_kernel(%arg0: i32, %arg1: memref<1x128xf32, #tpu.memory_space<vmem>>, %arg2: memref<128x64xbf16, #tpu.memory_space<vmem>>, %arg3: memref<1x64xf32, #tpu.memory_space<vmem>>, %arg4: memref<64x32xbf16, #tpu.memory_space<vmem>>, %arg5: memref<1x32xf32, #tpu.memory_space<vmem>>, %arg6: memref<32x32xbf16, #tpu.memory_space<vmem>>, %arg7: memref<1x32xf32, #tpu.memory_space<vmem>>, %arg8: memref<32x16xbf16, #tpu.memory_space<vmem>>, %arg9: memref<1x16xf32, #tpu.memory_space<vmem>>, %arg10: memref<16x16xbf16, #tpu.memory_space<vmem>>, %arg11: memref<1x16xf32, #tpu.memory_space<vmem>>, %arg12: memref<1x16xf32, #tpu.memory_space<vmem>>) attributes {dimension_semantics = [#tpu.dimension_semantics<parallel>], iteration_bounds = array<i64: 1>, scalar_prefetch = 0 : i64, scratch_operands = 0 : i64, tpu.core_type = #tpu.core_type<tc>, window_params = [{transform_indices = @transform_0, window_bounds = array<i64: 1, 128>}, {pipeline_mode = #tpu.pipeline_mode<synchronous>, transform_indices = @transform_1, window_bounds = array<i64: 128, 64>}, {pipeline_mode = #tpu.pipeline_mode<synchronous>, transform_indices = @transform_2, window_bounds = array<i64: 1, 64>}, {pipeline_mode = #tpu.pipeline_mode<synchronous>, transform_indices = @transform_3, window_bounds = array<i64: 64, 32>}, {pipeline_mode = #tpu.pipeline_mode<synchronous>, transform_indices = @transform_4, window_bounds = array<i64: 1, 32>}, {pipeline_mode = #tpu.pipeline_mode<synchronous>, transform_indices = @transform_5, window_bounds = array<i64: 32, 32>}, {pipeline_mode = #tpu.pipeline_mode<synchronous>, transform_indices = @transform_6, window_bounds = array<i64: 1, 32>}, {pipeline_mode = #tpu.pipeline_mode<synchronous>, transform_indices = @transform_7, window_bounds = array<i64: 32, 16>}, {pipeline_mode = #tpu.pipeline_mode<synchronous>, transform_indices = @transform_8, window_bounds = array<i64: 1, 16>}, {pipeline_mode = #tpu.pipeline_mode<synchronous>, transform_indices = @transform_9, window_bounds = array<i64: 16, 16>}, {pipeline_mode = #tpu.pipeline_mode<synchronous>, transform_indices = @transform_10, window_bounds = array<i64: 1, 16>}, {transform_indices = @transform_11, window_bounds = array<i64: 1, 16>}]} {
    %c0 = arith.constant 0 : index
    %c0_0 = arith.constant 0 : index
    %0 = vector.load %arg1[%c0, %c0_0] : memref<1x128xf32, #tpu.memory_space<vmem>>, vector<1x128xf32>
    %1 = arith.truncf %0 : vector<1x128xf32> to vector<1x128xbf16>
    %c0_1 = arith.constant 0 : index
    %c0_2 = arith.constant 0 : index
    %2 = vector.load %arg2[%c0_1, %c0_2] : memref<128x64xbf16, #tpu.memory_space<vmem>>, vector<128x64xbf16>
    %cst = arith.constant dense<0.000000e+00> : vector<1x64xf32>
    %3 = tpu.matmul %1, %2, %cst {dimension_numbers = #tpu.dot_dimension_numbers<[1], [0], [0], [1], [0, 0, 1, 1], [], []>} : vector<1x128xbf16>, vector<128x64xbf16>, vector<1x64xf32> -> vector<1x64xf32>
    %c0_3 = arith.constant 0 : index
    %c0_4 = arith.constant 0 : index
    %4 = vector.load %arg3[%c0_3, %c0_4] : memref<1x64xf32, #tpu.memory_space<vmem>>, vector<1x64xf32>
    %5 = arith.addf %3, %4 : vector<1x64xf32>
    %cst_5 = arith.constant 0.000000e+00 : f32
    %6 = vector.broadcast %cst_5 : f32 to vector<1x64xf32>
    %7 = arith.maximumf %5, %6 : vector<1x64xf32>
    %8 = arith.truncf %7 : vector<1x64xf32> to vector<1x64xbf16>
    %c0_6 = arith.constant 0 : index
    %c0_7 = arith.constant 0 : index
    %9 = vector.load %arg4[%c0_6, %c0_7] : memref<64x32xbf16, #tpu.memory_space<vmem>>, vector<64x32xbf16>
    %cst_8 = arith.constant dense<0.000000e+00> : vector<1x32xf32>
    %10 = tpu.matmul %8, %9, %cst_8 {dimension_numbers = #tpu.dot_dimension_numbers<[1], [0], [0], [1], [0, 0, 1, 1], [], []>} : vector<1x64xbf16>, vector<64x32xbf16>, vector<1x32xf32> -> vector<1x32xf32>
    %c0_9 = arith.constant 0 : index
    %c0_10 = arith.constant 0 : index
    %11 = vector.load %arg5[%c0_9, %c0_10] : memref<1x32xf32, #tpu.memory_space<vmem>>, vector<1x32xf32>
    %12 = arith.addf %10, %11 : vector<1x32xf32>
    %cst_11 = arith.constant 0.000000e+00 : f32
    %13 = vector.broadcast %cst_11 : f32 to vector<1x32xf32>
    %14 = arith.maximumf %12, %13 : vector<1x32xf32>
    %15 = arith.truncf %14 : vector<1x32xf32> to vector<1x32xbf16>
    %c0_12 = arith.constant 0 : index
    %c0_13 = arith.constant 0 : index
    %16 = vector.load %arg6[%c0_12, %c0_13] : memref<32x32xbf16, #tpu.memory_space<vmem>>, vector<32x32xbf16>
    %cst_14 = arith.constant dense<0.000000e+00> : vector<1x32xf32>
    %17 = tpu.matmul %15, %16, %cst_14 {dimension_numbers = #tpu.dot_dimension_numbers<[1], [0], [0], [1], [0, 0, 1, 1], [], []>} : vector<1x32xbf16>, vector<32x32xbf16>, vector<1x32xf32> -> vector<1x32xf32>
    %c0_15 = arith.constant 0 : index
    %c0_16 = arith.constant 0 : index
    %18 = vector.load %arg7[%c0_15, %c0_16] : memref<1x32xf32, #tpu.memory_space<vmem>>, vector<1x32xf32>
    %19 = arith.addf %17, %18 : vector<1x32xf32>
    %cst_17 = arith.constant 0.000000e+00 : f32
    %20 = vector.broadcast %cst_17 : f32 to vector<1x32xf32>
    %21 = arith.maximumf %19, %20 : vector<1x32xf32>
    %22 = arith.truncf %21 : vector<1x32xf32> to vector<1x32xbf16>
    %c0_18 = arith.constant 0 : index
    %c0_19 = arith.constant 0 : index
    %23 = vector.load %arg8[%c0_18, %c0_19] : memref<32x16xbf16, #tpu.memory_space<vmem>>, vector<32x16xbf16>
    %cst_20 = arith.constant dense<0.000000e+00> : vector<1x16xf32>
    %24 = tpu.matmul %22, %23, %cst_20 {dimension_numbers = #tpu.dot_dimension_numbers<[1], [0], [0], [1], [0, 0, 1, 1], [], []>} : vector<1x32xbf16>, vector<32x16xbf16>, vector<1x16xf32> -> vector<1x16xf32>
    %c0_21 = arith.constant 0 : index
    %c0_22 = arith.constant 0 : index
    %25 = vector.load %arg9[%c0_21, %c0_22] : memref<1x16xf32, #tpu.memory_space<vmem>>, vector<1x16xf32>
    %26 = arith.addf %24, %25 : vector<1x16xf32>
    %cst_23 = arith.constant 0.000000e+00 : f32
    %27 = vector.broadcast %cst_23 : f32 to vector<1x16xf32>
    %28 = arith.maximumf %26, %27 : vector<1x16xf32>
    %29 = arith.truncf %28 : vector<1x16xf32> to vector<1x16xbf16>
    %c0_24 = arith.constant 0 : index
    %c0_25 = arith.constant 0 : index
    %30 = vector.load %arg10[%c0_24, %c0_25] : memref<16x16xbf16, #tpu.memory_space<vmem>>, vector<16x16xbf16>
    %cst_26 = arith.constant dense<0.000000e+00> : vector<1x16xf32>
    %31 = tpu.matmul %29, %30, %cst_26 {dimension_numbers = #tpu.dot_dimension_numbers<[1], [0], [0], [1], [0, 0, 1, 1], [], []>} : vector<1x16xbf16>, vector<16x16xbf16>, vector<1x16xf32> -> vector<1x16xf32>
    %c0_27 = arith.constant 0 : index
    %c0_28 = arith.constant 0 : index
    %32 = vector.load %arg11[%c0_27, %c0_28] : memref<1x16xf32, #tpu.memory_space<vmem>>, vector<1x16xf32>
    %33 = arith.addf %31, %32 : vector<1x16xf32>
    %c0_29 = arith.constant 0 : index
    %c0_30 = arith.constant 0 : index
    %34 = vector.load %arg12[%c0_29, %c0_30] : memref<1x16xf32, #tpu.memory_space<vmem>>, vector<1x16xf32>
    tpu.vector_store %arg12[%c0_29, %c0_30], %33 {strides = array<i32>} : memref<1x16xf32, #tpu.memory_space<vmem>>, vector<1x16xf32>,
    return
  }
  func.func @transform_0(%arg0: i32) -> (i32, i32) {
    %c0_i32 = arith.constant 0 : i32
    %c0_i32_0 = arith.constant 0 : i32
    return %arg0, %c0_i32 : i32, i32
  }
  func.func @transform_1(%arg0: i32) -> (i32, i32) {
    %c0_i32 = arith.constant 0 : i32
    %c0_i32_0 = arith.constant 0 : i32
    %c0_i32_1 = arith.constant 0 : i32
    return %c0_i32, %c0_i32_0 : i32, i32
  }
  func.func @transform_2(%arg0: i32) -> (i32, i32) {
    %c0_i32 = arith.constant 0 : i32
    %c0_i32_0 = arith.constant 0 : i32
    %c0_i32_1 = arith.constant 0 : i32
    return %c0_i32, %c0_i32_0 : i32, i32
  }
  func.func @transform_3(%arg0: i32) -> (i32, i32) {
    %c0_i32 = arith.constant 0 : i32
    %c0_i32_0 = arith.constant 0 : i32
    %c0_i32_1 = arith.constant 0 : i32
    return %c0_i32, %c0_i32_0 : i32, i32
  }
  func.func @transform_4(%arg0: i32) -> (i32, i32) {
    %c0_i32 = arith.constant 0 : i32
    %c0_i32_0 = arith.constant 0 : i32
    %c0_i32_1 = arith.constant 0 : i32
    return %c0_i32, %c0_i32_0 : i32, i32
  }
  func.func @transform_5(%arg0: i32) -> (i32, i32) {
    %c0_i32 = arith.constant 0 : i32
    %c0_i32_0 = arith.constant 0 : i32
    %c0_i32_1 = arith.constant 0 : i32
    return %c0_i32, %c0_i32_0 : i32, i32
  }
  func.func @transform_6(%arg0: i32) -> (i32, i32) {
    %c0_i32 = arith.constant 0 : i32
    %c0_i32_0 = arith.constant 0 : i32
    %c0_i32_1 = arith.constant 0 : i32
    return %c0_i32, %c0_i32_0 : i32, i32
  }
  func.func @transform_7(%arg0: i32) -> (i32, i32) {
    %c0_i32 = arith.constant 0 : i32
    %c0_i32_0 = arith.constant 0 : i32
    %c0_i32_1 = arith.constant 0 : i32
    return %c0_i32, %c0_i32_0 : i32, i32
  }
  func.func @transform_8(%arg0: i32) -> (i32, i32) {
    %c0_i32 = arith.constant 0 : i32
    %c0_i32_0 = arith.constant 0 : i32
    %c0_i32_1 = arith.constant 0 : i32
    return %c0_i32, %c0_i32_0 : i32, i32
  }
  func.func @transform_9(%arg0: i32) -> (i32, i32) {
    %c0_i32 = arith.constant 0 : i32
    %c0_i32_0 = arith.constant 0 : i32
    %c0_i32_1 = arith.constant 0 : i32
    return %c0_i32, %c0_i32_0 : i32, i32
  }
  func.func @transform_10(%arg0: i32) -> (i32, i32) {
    %c0_i32 = arith.constant 0 : i32
    %c0_i32_0 = arith.constant 0 : i32
    %c0_i32_1 = arith.constant 0 : i32
    return %c0_i32, %c0_i32_0 : i32, i32
  }
  func.func @transform_11(%arg0: i32) -> (i32, i32) {
    %c0_i32 = arith.constant 0 : i32
    %c0_i32_0 = arith.constant 0 : i32
    return %arg0, %c0_i32 : i32, i32
  }
}

</mosaic_0001>

<llo_original>
// kernel: tpu_custom_call.1
$region0: #{tpu_custom_call.1}
  #allocation0 [shape = 'u32[]', space=smem, size = 0x4, offset = 0x4, fixed_abs, tag = 'smem constant byte address 0x4 - core index']
  #allocation1 [shape = 'u32[72,128]{1,0:T(1,128)}', space=vmem, size = 0x9000, scoped, tag = 'internal scratch']
  %s0 = inlined_call_operand.vmem [shape: f32[1,128], index: 0, kind: input, shape index: {}]
  %s1 = inlined_call_operand.vmem [shape: bf16[128,64], index: 1, kind: input, shape index: {}]
  %s2 = inlined_call_operand.vmem [shape: f32[1,64], index: 2, kind: input, shape index: {}]
  %s3 = inlined_call_operand.vmem [shape: bf16[64,32], index: 3, kind: input, shape index: {}]
  %s4 = inlined_call_operand.vmem [shape: f32[1,32], index: 4, kind: input, shape index: {}]
  %s5 = inlined_call_operand.vmem [shape: bf16[32,32], index: 5, kind: input, shape index: {}]
  %s6 = inlined_call_operand.vmem [shape: f32[1,32], index: 6, kind: input, shape index: {}]
  %s7 = inlined_call_operand.vmem [shape: bf16[32,16], index: 7, kind: input, shape index: {}]
  %s8 = inlined_call_operand.vmem [shape: f32[1,16], index: 8, kind: input, shape index: {}]
  %s9 = inlined_call_operand.vmem [shape: bf16[16,16], index: 9, kind: input, shape index: {}]
  %s10 = inlined_call_operand.vmem [shape: f32[1,16], index: 10, kind: input, shape index: {}]
  %s11 = inlined_call_operand.hbm [shape: f32[1,16], index: 11, kind: output, shape index: {}]
  %s12 = sld [smem:[#allocation0]]
  $region54: #{tpu_custom_call.1} parent=0
    _
  %s14 = ssub.s32 1, %s12
  %s15 = scalar_select 0, %s14, %s12
  $region1: #{tpu_custom_call.1} parent=0
    #allocation2 [shape = 'u8[512]{0}', space=vmem, size = 0x400, scoped, tag = 'output window, operand 0, single buffered']
    #allocation3 [shape = 's32[1]{0}', space=sflag, size = 0x4, scoped, tag = 'scoped memory for tpu_custom_call.1']
    %16 = vsyncpa [#allocation3], 0
    // Predicated region
    $region2: #{tpu_custom_call.1} parent=1 // pred_check
      _
    $region3: #{tpu_custom_call.1} parent=1 // pred_check_branch
      %18 = sbr.rel (0) target = $region5
    $region4: #{tpu_custom_call.1} parent=1 // pred_region
      _
    $region5: #{tpu_custom_call.1} parent=1 // pred_fallthru
      _
    // Predicated region
    $region6: #{tpu_custom_call.1} parent=1 // pred_check
      _
    $region7: #{tpu_custom_call.1} parent=1 // pred_check_branch
      %20 = sbr.rel (0) target = $region9
    $region8: #{tpu_custom_call.1} parent=1 // pred_region
      _
    $region9: #{tpu_custom_call.1} parent=1 // pred_fallthru
      _
    // Predicated region
    $region10: #{tpu_custom_call.1} parent=1 // pred_check
      _
    $region11: #{tpu_custom_call.1} parent=1 // pred_check_branch
      %22 = sbr.rel (0) target = $region13
    $region12: #{tpu_custom_call.1} parent=1 // pred_region
      _
    $region13: #{tpu_custom_call.1} parent=1 // pred_fallthru
      _
    // Predicated region
    $region14: #{tpu_custom_call.1} parent=1 // pred_check
      _
    $region15: #{tpu_custom_call.1} parent=1 // pred_check_branch
      %24 = sbr.rel (0) target = $region17
    $region16: #{tpu_custom_call.1} parent=1 // pred_region
      _
    $region17: #{tpu_custom_call.1} parent=1 // pred_fallthru
      _
    // Predicated region
    $region18: #{tpu_custom_call.1} parent=1 // pred_check
      _
    $region19: #{tpu_custom_call.1} parent=1 // pred_check_branch
      %26 = sbr.rel (0) target = $region21
    $region20: #{tpu_custom_call.1} parent=1 // pred_region
      _
    $region21: #{tpu_custom_call.1} parent=1 // pred_fallthru
      _
    // Predicated region
    $region22: #{tpu_custom_call.1} parent=1 // pred_check
      _
    $region23: #{tpu_custom_call.1} parent=1 // pred_check_branch
      %28 = sbr.rel (0) target = $region25
    $region24: #{tpu_custom_call.1} parent=1 // pred_region
      _
    $region25: #{tpu_custom_call.1} parent=1 // pred_fallthru
      _
    // Predicated region
    $region26: #{tpu_custom_call.1} parent=1 // pred_check
      _
    $region27: #{tpu_custom_call.1} parent=1 // pred_check_branch
      %30 = sbr.rel (0) target = $region29
    $region28: #{tpu_custom_call.1} parent=1 // pred_region
      _
    $region29: #{tpu_custom_call.1} parent=1 // pred_fallthru
      _
    // Predicated region
    $region30: #{tpu_custom_call.1} parent=1 // pred_check
      _
    $region31: #{tpu_custom_call.1} parent=1 // pred_check_branch
      %32 = sbr.rel (0) target = $region33
    $region32: #{tpu_custom_call.1} parent=1 // pred_region
      _
    $region33: #{tpu_custom_call.1} parent=1 // pred_fallthru
      _
    // Predicated region
    $region34: #{tpu_custom_call.1} parent=1 // pred_check
      _
    $region35: #{tpu_custom_call.1} parent=1 // pred_check_branch
      %34 = sbr.rel (0) target = $region37
    $region36: #{tpu_custom_call.1} parent=1 // pred_region
      _
    $region37: #{tpu_custom_call.1} parent=1 // pred_fallthru
      _
    // Predicated region
    $region38: #{tpu_custom_call.1} parent=1 // pred_check
      _
    $region39: #{tpu_custom_call.1} parent=1 // pred_check_branch
      %36 = sbr.rel (0) target = $region41
    $region40: #{tpu_custom_call.1} parent=1 // pred_region
      _
    $region41: #{tpu_custom_call.1} parent=1 // pred_fallthru
      _
    // Predicated region
    $region42: #{tpu_custom_call.1} parent=1 // pred_check
      _
    $region43: #{tpu_custom_call.1} parent=1 // pred_check_branch
      %38 = sbr.rel (0) target = $region45
    $region44: #{tpu_custom_call.1} parent=1 // pred_region
      _
    $region45: #{tpu_custom_call.1} parent=1 // pred_fallthru
      _
    %v40 = vld [vmem:[%s0] sm:$0x1]
    %v41 = vpack.c.bf16 %v40, %v40
    %v42 = vld [vmem:[%s1] sm:$0xf]
    %v43 = vld [vmem:[%s1 + $0x4] sm:$0xf]
    %v44 = vld [vmem:[%s1 + $0x8] sm:$0xf]
    %v45 = vld [vmem:[%s1 + $0xc] sm:$0xf]
    %v46 = vld [vmem:[%s1 + $0x10] sm:$0xf]
    %v47 = vld [vmem:[%s1 + $0x14] sm:$0xf]
    %v48 = vld [vmem:[%s1 + $0x18] sm:$0xf]
    %v49 = vld [vmem:[%s1 + $0x1c] sm:$0xf]
    %v50 = vld [vmem:[%s1 + $0x20] sm:$0xf]
    %v51 = vld [vmem:[%s1 + $0x24] sm:$0xf]
    %v52 = vld [vmem:[%s1 + $0x28] sm:$0xf]
    %v53 = vld [vmem:[%s1 + $0x2c] sm:$0xf]
    %v54 = vld [vmem:[%s1 + $0x30] sm:$0xf]
    %v55 = vld [vmem:[%s1 + $0x34] sm:$0xf]
    %v56 = vld [vmem:[%s1 + $0x38] sm:$0xf]
    %v57 = vld [vmem:[%s1 + $0x3c] sm:$0xf]
    %v58 = vld [vmem:[%s2] sm:$0x1]
    %v75 = vunpack.c.l.b16 %v42
    %v76 = vunpack.c.l.b16 %v43
    %v77 = vunpack.c.l.b16 %v44
    %v78 = vunpack.c.l.b16 %v45
    %v79 = vunpack.c.l.b16 %v46
    %v80 = vunpack.c.l.b16 %v47
    %v81 = vunpack.c.l.b16 %v48
    %v82 = vunpack.c.l.b16 %v49
    %v83 = vunpack.c.l.b16 %v50
    %v84 = vunpack.c.l.b16 %v51
    %v85 = vunpack.c.l.b16 %v52
    %v86 = vunpack.c.l.b16 %v53
    %v87 = vunpack.c.l.b16 %v54
    %v88 = vunpack.c.l.b16 %v55
    %v89 = vunpack.c.l.b16 %v56
    %v90 = vunpack.c.l.b16 %v57
    %v91 = vpack.c.b16 %v76, %v75
    %v92 = vpack.c.b16 %v78, %v77
    %v93 = vpack.c.b16 %v80, %v79
    %v94 = vpack.c.b16 %v82, %v81
    %v95 = vpack.c.b16 %v84, %v83
    %v96 = vpack.c.b16 %v86, %v85
    %v97 = vpack.c.b16 %v88, %v87
    %v98 = vpack.c.b16 %v90, %v89
    %107 = vmatpush.bf16.msra.mxu0 %v98
    %108 = vmatpush.bf16.msra.mxu0 %v97
    %109 = vmatpush.bf16.msra.mxu0 %v96
    %110 = vmatpush.bf16.msra.mxu0 %v95
    %111 = vmatpush.bf16.msra.mxu0 %v94
    %112 = vmatpush.bf16.msra.mxu0 %v93
    %113 = vmatpush.bf16.msra.mxu0 %v92
    %114 = vmatpush.bf16.msra.mxu0 %v91
    %115 = vmatmul.bf16.gmra.mxu0 %v41
    %v116 = vpop.f32.mrf.mxu0
    %v117 = vadd.f32 %v58, %v116
    %v118 = vpop.f32.mrf.mxu0
    %119 = vdwg.mxu0
    %v120 = vmax.f32 %v117, 0.0
    %v121 = vpack.c.bf16 %v120, %v120
    %v122 = vld [vmem:[%s3] sm:$0xf]
    %v123 = vld [vmem:[%s3 + $0x4] sm:$0xf]
    %v124 = vld [vmem:[%s3 + $0x8] sm:$0xf]
    %v125 = vld [vmem:[%s3 + $0xc] sm:$0xf]
    %v126 = vld [vmem:[%s3 + $0x10] sm:$0xf]
    %v127 = vld [vmem:[%s3 + $0x14] sm:$0xf]
    %v128 = vld [vmem:[%s3 + $0x18] sm:$0xf]
    %v129 = vld [vmem:[%s3 + $0x1c] sm:$0xf]
    %v130 = vld [vmem:[%s4] sm:$0x1]
    %v139 = vunpack.c.l.b16 %v122
    %v140 = vunpack.c.l.b16 %v123
    %v141 = vunpack.c.l.b16 %v124
    %v142 = vunpack.c.l.b16 %v125
    %v143 = vunpack.c.l.b16 %v126
    %v144 = vunpack.c.l.b16 %v127
    %v145 = vunpack.c.l.b16 %v128
    %v146 = vunpack.c.l.b16 %v129
    %v147 = vpack.c.b16 %v140, %v139
    %v148 = vpack.c.b16 %v142, %v141
    %v149 = vpack.c.b16 %v144, %v143
    %v150 = vpack.c.b16 %v146, %v145
    %vm155 = vcmask 523264
    %v157 = vsel %vm155, %v121, 0
    %159 = vmatpush.bf16.msra.mxu0 0
    %160 = vmatpush.bf16.msra.mxu0 0
    %161 = vmatpush.bf16.msra.mxu0 0
    %162 = vmatpush.bf16.msra.mxu0 0
    %163 = vmatpush.bf16.msra.mxu0 %v150
    %164 = vmatpush.bf16.msra.mxu0 %v149
    %165 = vmatpush.bf16.msra.mxu0 %v148
    %166 = vmatpush.bf16.msra.mxu0 %v147
    %167 = vmatmul.bf16.gmra.mxu0 %v157
    %v168 = vpop.f32.mrf.mxu0
    %v169 = vadd.f32 %v130, %v168
    %v170 = vpop.f32.mrf.mxu0
    %171 = vdwg.mxu0
    %v172 = vmax.f32 %v169, 0.0
    %v173 = vpack.c.bf16 %v172, %v172
    %v174 = vld [vmem:[%s5] sm:$0xf]
    %v175 = vld [vmem:[%s5 + $0x4] sm:$0xf]
    %v176 = vld [vmem:[%s5 + $0x8] sm:$0xf]
    %v177 = vld [vmem:[%s5 + $0xc] sm:$0xf]
    %v178 = vld [vmem:[%s6] sm:$0x1]
    %v183 = vunpack.c.l.b16 %v174
    %v184 = vunpack.c.l.b16 %v175
    %v185 = vunpack.c.l.b16 %v176
    %v186 = vunpack.c.l.b16 %v177
    %v187 = vpack.c.b16 %v184, %v183
    %v188 = vpack.c.b16 %v186, %v185
    %vm191 = vcmask 261120
    %v193 = vsel %vm191, %v173, 0
    %195 = vmatpush.bf16.msra.mxu0 0
    %196 = vmatpush.bf16.msra.mxu0 0
    %197 = vmatpush.bf16.msra.mxu0 0
    %198 = vmatpush.bf16.msra.mxu0 0
    %199 = vmatpush.bf16.msra.mxu0 0
    %200 = vmatpush.bf16.msra.mxu0 0
    %201 = vmatpush.bf16.msra.mxu0 %v188
    %202 = vmatpush.bf16.msra.mxu0 %v187
    %203 = vmatmul.bf16.gmra.mxu0 %v193
    %v204 = vpop.f32.mrf.mxu0
    %v205 = vadd.f32 %v178, %v204
    %v206 = vpop.f32.mrf.mxu0
    %207 = vdwg.mxu0
    %v208 = vmax.f32 %v205, 0.0
    %v209 = vpack.c.bf16 %v208, %v208
    %v210 = vld [vmem:[%s7] sm:$0xf]
    %v211 = vld [vmem:[%s7 + $0x4] sm:$0xf]
    %v212 = vld [vmem:[%s7 + $0x8] sm:$0xf]
    %v213 = vld [vmem:[%s7 + $0xc] sm:$0xf]
    %v214 = vld [vmem:[%s8] sm:$0x1]
    %v219 = vunpack.c.l.b16 %v210
    %v220 = vunpack.c.l.b16 %v211
    %v221 = vunpack.c.l.b16 %v212
    %v222 = vunpack.c.l.b16 %v213
    %v223 = vpack.c.b16 %v220, %v219
    %v224 = vpack.c.b16 %v222, %v221
    %v228 = vsel %vm191, %v209, 0
    %230 = vmatpush.bf16.msra.mxu0 0
    %231 = vmatpush.bf16.msra.mxu0 0
    %232 = vmatpush.bf16.msra.mxu0 0
    %233 = vmatpush.bf16.msra.mxu0 0
    %234 = vmatpush.bf16.msra.mxu0 0
    %235 = vmatpush.bf16.msra.mxu0 0
    %236 = vmatpush.bf16.msra.mxu0 %v224
    %237 = vmatpush.bf16.msra.mxu0 %v223
    %238 = vmatmul.bf16.gmra.mxu0 %v228
    %v239 = vpop.f32.mrf.mxu0
    %v240 = vadd.f32 %v214, %v239
    %v241 = vpop.f32.mrf.mxu0
    %242 = vdwg.mxu0
    %v243 = vmax.f32 %v240, 0.0
    %v244 = vpack.c.bf16 %v243, %v243
    %v245 = vld [vmem:[%s9] sm:$0xf]
    %v246 = vld [vmem:[%s9 + $0x4] sm:$0xf]
    %v247 = vld [vmem:[%s10] sm:$0x1]
    %v250 = vunpack.c.l.b16 %v245
    %v251 = vunpack.c.l.b16 %v246
    %v252 = vpack.c.b16 %v251, %v250
    %vm254 = vcmask 130048
    %v256 = vsel %vm254, %v244, 0
    %258 = vmatpush.bf16.msra.mxu0 0
    %259 = vmatpush.bf16.msra.mxu0 0
    %260 = vmatpush.bf16.msra.mxu0 0
    %261 = vmatpush.bf16.msra.mxu0 0
    %262 = vmatpush.bf16.msra.mxu0 0
    %263 = vmatpush.bf16.msra.mxu0 0
    %264 = vmatpush.bf16.msra.mxu0 0
    %265 = vmatpush.bf16.msra.mxu0 %v252
    %266 = vmatmul.bf16.gmra.mxu0 %v256
    %v267 = vpop.f32.mrf.mxu0
    %v268 = vadd.f32 %v247, %v267
    %v269 = vpop.f32.mrf.mxu0
    %270 = vdwg.mxu0
    %vm271 = vcmask 122880
    %272 = vst.msk [vmem:[#allocation2] sm:$0x1] %vm271, %v268
    // Predicated region
    $region46: #{tpu_custom_call.1} parent=1 // pred_check
      _
    $region47: #{tpu_custom_call.1} parent=1 // pred_check_branch
      %274 = sbr.rel (0) target = $region49
    $region48: #{tpu_custom_call.1} parent=1 // pred_region
      %276 = vsyncadd [#allocation3], 0
      %s278 = sshll.u32 [#allocation2], 4
      %s279 = int_to_ptr.vmem [resolvable:$true] %s278
      %s280 = sshll.u32 %s11, 4
      %s281 = int_to_ptr.hbm [resolvable:$true] %s280
      %283 = dma.vmem_to_hbm [thread:$0]  %s279, 16, %s281, [#allocation3]
    $region49: #{tpu_custom_call.1} parent=1 // pred_fallthru
      _
    // Predicated region
    $region50: #{tpu_custom_call.1} parent=1 // pred_check
      _
    $region51: #{tpu_custom_call.1} parent=1 // pred_check_branch
      %285 = sbr.rel (0) target = $region53
    $region52: #{tpu_custom_call.1} parent=1 // pred_region
      %287 = dma.done [#allocation3], 16
    $region53: #{tpu_custom_call.1} parent=1 // pred_fallthru
      _
    %288 = vsyncpa [#allocation3], 1

</llo_original>
